<compile_context>
chip_gen: v5e
topology: v5e:2x2
jax: 0.10.0
libtpu: 0.0.40
codegen_flags: <defaults>
</compile_context>

<pallas_src>
import functools

import jax
import jax.numpy as jnp
from jax import lax
from jax.experimental import pallas as pl
from jax.experimental.pallas import tpu as pltpu


class Config:
    # loss_target from the legacy patch-training config: obj * cls
    loss_target = staticmethod(lambda obj, cls: obj * cls)


def _max_conf_kernel(in_ref, out_ref, run_max_ref, *,
                     cls_id, n_total, channels_last, needs_mask):
    # Grid: axis 0 = batch tiles (parallel), axis 1 = N tiles (reduction, LAST).
    # The running-max scratch relies on the reduction axis being the
    # fastest-varying grid axis and on each core owning whole batch slices
    # (true for ("parallel", "arbitrary") on this grid) — do not reorder.
    i = pl.program_id(1)
    n_tiles = pl.num_programs(1)

    @pl.when(i == 0)
    def _init():
        run_max_ref[...] = jnp.full(run_max_ref.shape, -jnp.inf,
                                    run_max_ref.dtype)

    if channels_last:
        # in_ref: (tb, tile_n, D), D on lanes. Slice only the two needed
        # channels straight off the VMEM ref (no full-tile vreg materialize).
        obj = in_ref[:, :, 4].astype(jnp.float32)
        cls = in_ref[:, :, cls_id + 5].astype(jnp.float32)
    else:
        # in_ref: (2, tb, tile_n) — already channel-sliced, lane-dense over N.
        x = in_ref[...]
        obj = x[0].astype(jnp.float32)
        cls = x[1].astype(jnp.float32)
    picked = Config.loss_target(obj, cls)            # (tb, tile_n)
    tile_n = picked.shape[-1]

    if needs_mask:
        is_last = i == n_tiles - 1

        @pl.when(i < n_tiles - 1)
        def _update():
            run_max_ref[...] = jnp.maximum(run_max_ref[...], picked)

        @pl.when(is_last)
        def _update_masked():
            # Mask detections beyond N (partial last tile) to -inf; only paid
            # on the final reduction step.
            pos = i * tile_n + lax.broadcasted_iota(jnp.int32, picked.shape, 1)
            masked = jnp.where(pos < n_total, picked, -jnp.inf)
            run_max_ref[...] = jnp.maximum(run_max_ref[...], masked)
    else:
        run_max_ref[...] = jnp.maximum(run_max_ref[...], picked)

    # One cross-lane reduce + one narrow (tb, 1) store, only on the last step.
    @pl.when(i == n_tiles - 1)
    def _finalize():
        # NOTE: accumulation is f32; the cast back to the input dtype can
        # differ from a pure-bf16 max by one ulp for bf16 inputs.
        out_ref[...] = jnp.max(run_max_ref[...], axis=-1,
                               keepdims=True).astype(out_ref.dtype)


def yolov3_output_extractor(detections, cls_id, *, tile_n=1024,
                            vmem_budget_bytes=12 * 1024 * 1024):
    """detections: [B, N, D] with D = 5 + num_cls. Returns [B] (torch.max(picked, 1)[0])."""
    B, N, D = detections.shape
    assert 0 <= cls_id and cls_id + 5 < D, "cls_id out of range for D = 5 + num_cls"
    itemsize = jnp.dtype(detections.dtype).itemsize

    # dtype-aware sublane granularity: 8 (f32), 16 (bf16), 32 (int8/fp8).
    sub = max(8, 32 // itemsize)
    # Batch tile: full extent for small B, else one sublane group (partial
    # last batch tile is handled by Pallas; garbage rows are discarded).
    tb = B if B <= sub else sub

    # Keep the double-buffered, lane-padded (D -> 128) input window under the
    # VMEM budget (safe for v5e's 16 MiB default scoped VMEM).
    max_tile = vmem_budget_bytes // (2 * tb * 128 * itemsize)
    tile_n = min(tile_n, max(sub, (max_tile // sub) * sub))
    if tile_n >= N:
        tile_n = N                      # full extent is always legal
    else:
        tile_n = max(sub, (tile_n // sub) * sub)

    needs_mask = (N % tile_n) != 0
    grid = (pl.cdiv(B, tb), pl.cdiv(N, tile_n))

    kernel = functools.partial(
        _max_conf_kernel, cls_id=cls_id, n_total=N,
        channels_last=True, needs_mask=needs_mask)

    out = pl.pallas_call(
        kernel,
        out_shape=jax.ShapeDtypeStruct((B, 1), detections.dtype),
        grid_spec=pltpu.PrefetchScalarGridSpec(
            num_scalar_prefetch=0,
            grid=grid,
            in_specs=[pl.BlockSpec((tb, tile_n, D), lambda b, i: (b, i, 0))],
            out_specs=pl.BlockSpec((tb, 1), lambda b, i: (b, 0)),
            scratch_shapes=[pltpu.VMEM((tb, tile_n), jnp.float32)],
        ),
        compiler_params=pltpu.CompilerParams(
            dimension_semantics=("parallel", "arbitrary")),
        cost_estimate=pl.CostEstimate(
            flops=3 * B * N, transcendentals=0,
            bytes_accessed=B * N * D * itemsize + B * itemsize),
    )(detections)
    return out[:, 0]


def yolov3_output_extractor_presliced(obj_cls, *, tile_n=2048,
                                      vmem_budget_bytes=12 * 1024 * 1024):
    """Fast path when the producer emits a channels-major, pre-sliced tensor.

    obj_cls: [2, B, N] with obj_cls[0] = object_conf, obj_cls[1] = class_conf.
    DMAs only the two needed channel rows (lane-dense over N), ~D/2x less HBM
    traffic than the [B, N, D] layout and no in-kernel cross-lane gather.
    """
    C, B, N = obj_cls.shape
    assert C == 2
    itemsize = jnp.dtype(obj_cls.dtype).itemsize

    sub = max(8, 32 // itemsize)
    tb = B if B <= sub else sub

    # N is the lane (minor) dim here: tile must be a multiple of 128 or full N.
    max_tile = vmem_budget_bytes // (2 * 2 * max(tb, 8) * itemsize)
    tile_n = min(tile_n, max(128, (max_tile // 128) * 128))
    if tile_n >= N:
        tile_n = N
    else:
        tile_n = max(128, (tile_n // 128) * 128)

    needs_mask = (N % tile_n) != 0
    grid = (pl.cdiv(B, tb), pl.cdiv(N, tile_n))

    kernel = functools.partial(
        _max_conf_kernel, cls_id=0, n_total=N,
        channels_last=False, needs_mask=needs_mask)

    out = pl.pallas_call(
        kernel,
        out_shape=jax.ShapeDtypeStruct((B, 1), obj_cls.dtype),
        grid_spec=pltpu.PrefetchScalarGridSpec(
            num_scalar_prefetch=0,
            grid=grid,
            in_specs=[pl.BlockSpec((2, tb, tile_n), lambda b, i: (0, b, i))],
            out_specs=pl.BlockSpec((tb, 1), lambda b, i: (b, 0)),
            scratch_shapes=[pltpu.VMEM((tb, tile_n), jnp.float32)],
        ),
        compiler_params=pltpu.CompilerParams(
            dimension_semantics=("parallel", "arbitrary")),
        cost_estimate=pl.CostEstimate(
            flops=3 * B * N, transcendentals=0,
            bytes_accessed=2 * B * N * itemsize + B * itemsize),
    )(obj_cls)
    return out[:, 0]


def _reference(detections, cls_id):
    obj = detections[:, :, 4]
    cls = detections[:, :, cls_id + 5]
    picked = Config.loss_target(obj, cls)
    return jnp.max(picked, axis=1)


if __name__ == "__main__":
    # Small, deterministic example consistent with YOLOv3 output [B, N, 5+num_cls]
    B, N, num_cls = 2, 128, 20
    cls_id = 3
    D = 5 + num_cls

    key = jax.random.PRNGKey(0)
    detections = jax.random.uniform(key, (B, N, D), dtype=jnp.float32)

    max_conf = jax.block_until_ready(yolov3_output_extractor(detections, cls_id))
    ref = _reference(detections, cls_id)
    assert max_conf.shape == (B,)
    assert jnp.allclose(max_conf, ref, atol=1e-6, rtol=1e-6), (max_conf, ref)

    # Multi-tile reduction with a masked tail + batch tiling (B > 8 -> tb = 8).
    B2, N2 = 16, 1000   # 1000 not a multiple of tile_n=512 -> masked last tile
    det2 = jax.random.uniform(jax.random.PRNGKey(1), (B2, N2, D), dtype=jnp.float32)
    out2 = jax.block_until_ready(
        yolov3_output_extractor(det2, cls_id, tile_n=512))
    assert jnp.allclose(out2, _reference(det2, cls_id), atol=1e-6, rtol=1e-6)

    # Channels-major fast path: producer-supplied pre-sliced [2, B, N].
    obj_cls = jnp.stack([det2[:, :, 4], det2[:, :, cls_id + 5]], axis=0)
    out3 = jax.block_until_ready(
        yolov3_output_extractor_presliced(obj_cls, tile_n=512))
    assert jnp.allclose(out3, _reference(det2, cls_id), atol=1e-6, rtol=1e-6)

    print("KERNEL_OK")
</pallas_src>

<mosaic_0001>
module attributes {stable_mosaic.version = 11 : i64} {
  func.func @_max_conf_kernel(%arg0: i32, %arg1: i32, %arg2: memref<2x128x25xf32, #tpu.memory_space<vmem>>, %arg3: memref<2x1xf32, #tpu.memory_space<vmem>>, %arg4: memref<2x128xf32, #tpu.memory_space<vmem>>) attributes {dimension_semantics = [#tpu.dimension_semantics<parallel>, #tpu.dimension_semantics<arbitrary>], iteration_bounds = array<i64: 1, 1>, scalar_prefetch = 0 : i64, scratch_operands = 1 : i64, tpu.core_type = #tpu.core_type<tc>, window_params = [{transform_indices = @transform_0, window_bounds = array<i64: 2, 128, 25>}, {transform_indices = @transform_1, window_bounds = array<i64: 2, 1>}]} {
    %c0_i32 = arith.constant 0 : i32
    %0 = arith.cmpi eq, %arg1, %c0_i32 : i32
    %1 = arith.extui %0 : i1 to i32
    %c0_i32_0 = arith.constant 0 : i32
    %2 = arith.cmpi ne, %1, %c0_i32_0 : i32
    scf.if %2 {
      %cst = arith.constant 0xFF800000 : f32
      %14 = vector.broadcast %cst : f32 to vector<2x128xf32>
      %c0_10 = arith.constant 0 : index
      %c0_11 = arith.constant 0 : index
      %15 = vector.load %arg4[%c0_10, %c0_11] : memref<2x128xf32, #tpu.memory_space<vmem>>, vector<2x128xf32>
      tpu.vector_store %arg4[%c0_10, %c0_11], %14 {strides = array<i32>} : memref<2x128xf32, #tpu.memory_space<vmem>>, vector<2x128xf32>,
    } else {
    }
    %c0 = arith.constant 0 : index
    %c0_1 = arith.constant 0 : index
    %c4 = arith.constant 4 : index
    %3 = vector.load %arg2[%c0, %c0_1, %c4] : memref<2x128x25xf32, #tpu.memory_space<vmem>>, vector<2x128x1xf32>
    %4 = vector.shape_cast %3 : vector<2x128x1xf32> to vector<2x128xf32>
    %c0_2 = arith.constant 0 : index
    %c0_3 = arith.constant 0 : index
    %c8 = arith.constant 8 : index
    %5 = vector.load %arg2[%c0_2, %c0_3, %c8] : memref<2x128x25xf32, #tpu.memory_space<vmem>>, vector<2x128x1xf32>
    %6 = vector.shape_cast %5 : vector<2x128x1xf32> to vector<2x128xf32>
    %7 = arith.mulf %4, %6 : vector<2x128xf32>
    %c0_4 = arith.constant 0 : index
    %c0_5 = arith.constant 0 : index
    %8 = vector.load %arg4[%c0_4, %c0_5] : memref<2x128xf32, #tpu.memory_space<vmem>>, vector<2x128xf32>
    %9 = arith.maximumf %8, %7 : vector<2x128xf32>
    %c0_6 = arith.constant 0 : index
    %c0_7 = arith.constant 0 : index
    %10 = vector.load %arg4[%c0_6, %c0_7] : memref<2x128xf32, #tpu.memory_space<vmem>>, vector<2x128xf32>
    tpu.vector_store %arg4[%c0_6, %c0_7], %9 {strides = array<i32>} : memref<2x128xf32, #tpu.memory_space<vmem>>, vector<2x128xf32>,
    %c0_i32_8 = arith.constant 0 : i32
    %11 = arith.cmpi eq, %arg1, %c0_i32_8 : i32
    %12 = arith.extui %11 : i1 to i32
    %c0_i32_9 = arith.constant 0 : i32
    %13 = arith.cmpi ne, %12, %c0_i32_9 : i32
    scf.if %13 {
      %c0_10 = arith.constant 0 : index
      %c0_11 = arith.constant 0 : index
      %14 = vector.load %arg4[%c0_10, %c0_11] : memref<2x128xf32, #tpu.memory_space<vmem>>, vector<2x128xf32>
      %cst = arith.constant dense<0xFF800000> : vector<2xf32>
      %15 = vector.multi_reduction <maximumf>, %14, %cst [1] : vector<2x128xf32> to vector<2xf32>
      %16 = vector.shape_cast %15 : vector<2xf32> to vector<2x1xf32>
      %c0_12 = arith.constant 0 : index
      %c0_13 = arith.constant 0 : index
      %17 = vector.load %arg3[%c0_12, %c0_13] : memref<2x1xf32, #tpu.memory_space<vmem>>, vector<2x1xf32>
      tpu.vector_store %arg3[%c0_12, %c0_13], %16 {strides = array<i32>} : memref<2x1xf32, #tpu.memory_space<vmem>>, vector<2x1xf32>,
    } else {
    }
    return
  }
  func.func @transform_0(%arg0: i32, %arg1: i32) -> (i32, i32, i32) {
    %c0_i32 = arith.constant 0 : i32
    %c0_i32_0 = arith.constant 0 : i32
    return %arg0, %arg1, %c0_i32 : i32, i32, i32
  }
  func.func @transform_1(%arg0: i32, %arg1: i32) -> (i32, i32) {
    %c0_i32 = arith.constant 0 : i32
    %c0_i32_0 = arith.constant 0 : i32
    return %arg0, %c0_i32 : i32, i32
  }
}

</mosaic_0001>

<llo_original>
// kernel: tpu_custom_call.1
$region0: #{tpu_custom_call.1}
  #allocation0 [shape = 'u32[]', space=smem, size = 0x4, offset = 0x4, fixed_abs, tag = 'smem constant byte address 0x4 - core index']
  #allocation1 [shape = 'u32[72,128]{1,0:T(1,128)}', space=vmem, size = 0x9000, scoped, tag = 'internal scratch']
  #allocation2 [shape = 'f32[2,128]{1,0:T(2,128)}', space=vmem, size = 0x400, scoped, tag = 'scratch operand']
  %s0 = inlined_call_operand.vmem [shape: f32[2,128,25], index: 0, kind: input, shape index: {}]
  %s1 = inlined_call_operand.vmem [shape: f32[2,1], index: 1, kind: output, shape index: {}]
  %s2 = sld [smem:[#allocation0]]
  $region22: #{tpu_custom_call.1} parent=0
    _
  %s4 = ssub.s32 1, %s2
  %s5 = scalar_select 0, %s4, %s2
  // Predicated region
  $region2: #{tpu_custom_call.1} parent=0 // pred_check
    _
  $region3: #{tpu_custom_call.1} parent=0 // pred_check_branch
    %7 = sbr.rel (0) target = $region5
  $region4: #{tpu_custom_call.1} parent=0 // pred_region
    _
  $region5: #{tpu_custom_call.1} parent=0 // pred_fallthru
    _
  %p8 = scmp.eq.s32.totalorder 0, 0
  // Predicated region
  $region6: #{tpu_custom_call.1} parent=0 // pred_check
    %p9 = pneg %p8
  $region7: #{tpu_custom_call.1} parent=0 // pred_check_branch
    %11 = sbr.rel (%p9) target = $region9
  $region8: #{tpu_custom_call.1} parent=0 // pred_region
    %12 = vst [vmem:[#allocation2] sm:$0x3] -inf
  $region9: #{tpu_custom_call.1} parent=0 // pred_fallthru
    _
  %v13 = vld [vmem:[%s0] sm:$0xff]
  %v14 = vld [vmem:[%s0 + $0x8] sm:$0xff]
  %v15 = vld [vmem:[%s0 + $0x10] sm:$0xff]
  %v16 = vld [vmem:[%s0 + $0x18] sm:$0xff]
  %v17 = vld [vmem:[%s0 + $0x20] sm:$0xff]
  %v18 = vld [vmem:[%s0 + $0x28] sm:$0xff]
  %v19 = vld [vmem:[%s0 + $0x30] sm:$0xff]
  %v20 = vld [vmem:[%s0 + $0x38] sm:$0xff]
  %v21 = vld [vmem:[%s0 + $0x40] sm:$0xff]
  %v22 = vld [vmem:[%s0 + $0x48] sm:$0xff]
  %v23 = vld [vmem:[%s0 + $0x50] sm:$0xff]
  %v24 = vld [vmem:[%s0 + $0x58] sm:$0xff]
  %v25 = vld [vmem:[%s0 + $0x60] sm:$0xff]
  %v26 = vld [vmem:[%s0 + $0x68] sm:$0xff]
  %v27 = vld [vmem:[%s0 + $0x70] sm:$0xff]
  %v28 = vld [vmem:[%s0 + $0x78] sm:$0xff]
  %v29 = vld [vmem:[%s0 + $0x80] sm:$0xff]
  %v30 = vld [vmem:[%s0 + $0x88] sm:$0xff]
  %v31 = vld [vmem:[%s0 + $0x90] sm:$0xff]
  %v32 = vld [vmem:[%s0 + $0x98] sm:$0xff]
  %v33 = vld [vmem:[%s0 + $0xa0] sm:$0xff]
  %v34 = vld [vmem:[%s0 + $0xa8] sm:$0xff]
  %v35 = vld [vmem:[%s0 + $0xb0] sm:$0xff]
  %v36 = vld [vmem:[%s0 + $0xb8] sm:$0xff]
  %v37 = vld [vmem:[%s0 + $0xc0] sm:$0xff]
  %v38 = vld [vmem:[%s0 + $0xc8] sm:$0xff]
  %v39 = vld [vmem:[%s0 + $0xd0] sm:$0xff]
  %v40 = vld [vmem:[%s0 + $0xd8] sm:$0xff]
  %v41 = vld [vmem:[%s0 + $0xe0] sm:$0xff]
  %v42 = vld [vmem:[%s0 + $0xe8] sm:$0xff]
  %v43 = vld [vmem:[%s0 + $0xf0] sm:$0xff]
  %v44 = vld [vmem:[%s0 + $0xf8] sm:$0xff]
  %77 = vrot.lane.b32.xlu0 %v13, 124
  %v78 = vpop.permute.xlu0 %77
  %79 = vrot.lane.b32.xlu0 %v14, 124
  %v80 = vpop.permute.xlu0 %79
  %81 = vrot.lane.b32.xlu0 %v15, 124
  %v82 = vpop.permute.xlu0 %81
  %83 = vrot.lane.b32.xlu0 %v16, 124
  %v84 = vpop.permute.xlu0 %83
  %85 = vrot.lane.b32.xlu0 %v17, 124
  %v86 = vpop.permute.xlu0 %85
  %87 = vrot.lane.b32.xlu0 %v18, 124
  %v88 = vpop.permute.xlu0 %87
  %89 = vrot.lane.b32.xlu0 %v19, 124
  %v90 = vpop.permute.xlu0 %89
  %91 = vrot.lane.b32.xlu0 %v20, 124
  %v92 = vpop.permute.xlu0 %91
  %93 = vrot.lane.b32.xlu0 %v21, 124
  %v94 = vpop.permute.xlu0 %93
  %95 = vrot.lane.b32.xlu0 %v22, 124
  %v96 = vpop.permute.xlu0 %95
  %97 = vrot.lane.b32.xlu0 %v23, 124
  %v98 = vpop.permute.xlu0 %97
  %99 = vrot.lane.b32.xlu0 %v24, 124
  %v100 = vpop.permute.xlu0 %99
  %101 = vrot.lane.b32.xlu0 %v25, 124
  %v102 = vpop.permute.xlu0 %101
  %103 = vrot.lane.b32.xlu0 %v26, 124
  %v104 = vpop.permute.xlu0 %103
  %105 = vrot.lane.b32.xlu0 %v27, 124
  %v106 = vpop.permute.xlu0 %105
  %107 = vrot.lane.b32.xlu0 %v28, 124
  %v108 = vpop.permute.xlu0 %107
  %109 = vrot.lane.b32.xlu0 %v29, 124
  %v110 = vpop.permute.xlu0 %109
  %111 = vrot.lane.b32.xlu0 %v30, 124
  %v112 = vpop.permute.xlu0 %111
  %113 = vrot.lane.b32.xlu0 %v31, 124
  %v114 = vpop.permute.xlu0 %113
  %115 = vrot.lane.b32.xlu0 %v32, 124
  %v116 = vpop.permute.xlu0 %115
  %117 = vrot.lane.b32.xlu0 %v33, 124
  %v118 = vpop.permute.xlu0 %117
  %119 = vrot.lane.b32.xlu0 %v34, 124
  %v120 = vpop.permute.xlu0 %119
  %121 = vrot.lane.b32.xlu0 %v35, 124
  %v122 = vpop.permute.xlu0 %121
  %123 = vrot.lane.b32.xlu0 %v36, 124
  %v124 = vpop.permute.xlu0 %123
  %125 = vrot.lane.b32.xlu0 %v37, 124
  %v126 = vpop.permute.xlu0 %125
  %127 = vrot.lane.b32.xlu0 %v38, 124
  %v128 = vpop.permute.xlu0 %127
  %129 = vrot.lane.b32.xlu0 %v39, 124
  %v130 = vpop.permute.xlu0 %129
  %131 = vrot.lane.b32.xlu0 %v40, 124
  %v132 = vpop.permute.xlu0 %131
  %133 = vrot.lane.b32.xlu0 %v41, 124
  %v134 = vpop.permute.xlu0 %133
  %135 = vrot.lane.b32.xlu0 %v42, 124
  %v136 = vpop.permute.xlu0 %135
  %137 = vrot.lane.b32.xlu0 %v43, 124
  %v138 = vpop.permute.xlu0 %137
  %139 = vrot.lane.b32.xlu0 %v44, 124
  %v140 = vpop.permute.xlu0 %139
  %v173 = vmul.f32 %v13, %v78
  %v174 = vmul.f32 %v14, %v80
  %v175 = vmul.f32 %v15, %v82
  %v176 = vmul.f32 %v16, %v84
  %v177 = vmul.f32 %v17, %v86
  %v178 = vmul.f32 %v18, %v88
  %v179 = vmul.f32 %v19, %v90
  %v180 = vmul.f32 %v20, %v92
  %v181 = vmul.f32 %v21, %v94
  %v182 = vmul.f32 %v22, %v96
  %v183 = vmul.f32 %v23, %v98
  %v184 = vmul.f32 %v24, %v100
  %v185 = vmul.f32 %v25, %v102
  %v186 = vmul.f32 %v26, %v104
  %v187 = vmul.f32 %v27, %v106
  %v188 = vmul.f32 %v28, %v108
  %v189 = vmul.f32 %v29, %v110
  %v190 = vmul.f32 %v30, %v112
  %v191 = vmul.f32 %v31, %v114
  %v192 = vmul.f32 %v32, %v116
  %v193 = vmul.f32 %v33, %v118
  %v194 = vmul.f32 %v34, %v120
  %v195 = vmul.f32 %v35, %v122
  %v196 = vmul.f32 %v36, %v124
  %v197 = vmul.f32 %v37, %v126
  %v198 = vmul.f32 %v38, %v128
  %v199 = vmul.f32 %v39, %v130
  %v200 = vmul.f32 %v40, %v132
  %v201 = vmul.f32 %v41, %v134
  %v202 = vmul.f32 %v42, %v136
  %v203 = vmul.f32 %v43, %v138
  %v204 = vmul.f32 %v44, %v140
  %v205 = vld [vmem:[#allocation2] sm:$0x3]
  %238 = vset.pattern.permute.xlu0 4
  %239 = vperm.xlu0 %238, %v173
  %v240 = vpop.permute.xlu0 %239
  %241 = vset.pattern.permute.xlu0 4
  %242 = vperm.xlu0 %241, %v174
  %v243 = vpop.permute.xlu0 %242
  %244 = vset.pattern.permute.xlu0 4
  %245 = vperm.xlu0 %244, %v175
  %v246 = vpop.permute.xlu0 %245
  %247 = vset.pattern.permute.xlu0 4
  %248 = vperm.xlu0 %247, %v176
  %v249 = vpop.permute.xlu0 %248
  %250 = vset.pattern.permute.xlu0 4
  %251 = vperm.xlu0 %250, %v177
  %v252 = vpop.permute.xlu0 %251
  %253 = vset.pattern.permute.xlu0 4
  %254 = vperm.xlu0 %253, %v178
  %v255 = vpop.permute.xlu0 %254
  %256 = vset.pattern.permute.xlu0 4
  %257 = vperm.xlu0 %256, %v179
  %v258 = vpop.permute.xlu0 %257
  %259 = vset.pattern.permute.xlu0 4
  %260 = vperm.xlu0 %259, %v180
  %v261 = vpop.permute.xlu0 %260
  %262 = vset.pattern.permute.xlu0 4
  %263 = vperm.xlu0 %262, %v181
  %v264 = vpop.permute.xlu0 %263
  %265 = vset.pattern.permute.xlu0 4
  %266 = vperm.xlu0 %265, %v182
  %v267 = vpop.permute.xlu0 %266
  %268 = vset.pattern.permute.xlu0 4
  %269 = vperm.xlu0 %268, %v183
  %v270 = vpop.permute.xlu0 %269
  %271 = vset.pattern.permute.xlu0 4
  %272 = vperm.xlu0 %271, %v184
  %v273 = vpop.permute.xlu0 %272
  %274 = vset.pattern.permute.xlu0 4
  %275 = vperm.xlu0 %274, %v185
  %v276 = vpop.permute.xlu0 %275
  %277 = vset.pattern.permute.xlu0 4
  %278 = vperm.xlu0 %277, %v186
  %v279 = vpop.permute.xlu0 %278
  %280 = vset.pattern.permute.xlu0 4
  %281 = vperm.xlu0 %280, %v187
  %v282 = vpop.permute.xlu0 %281
  %283 = vset.pattern.permute.xlu0 4
  %284 = vperm.xlu0 %283, %v188
  %v285 = vpop.permute.xlu0 %284
  %286 = vset.pattern.permute.xlu0 4
  %287 = vperm.xlu0 %286, %v189
  %v288 = vpop.permute.xlu0 %287
  %289 = vset.pattern.permute.xlu0 4
  %290 = vperm.xlu0 %289, %v190
  %v291 = vpop.permute.xlu0 %290
  %292 = vset.pattern.permute.xlu0 4
  %293 = vperm.xlu0 %292, %v191
  %v294 = vpop.permute.xlu0 %293
  %295 = vset.pattern.permute.xlu0 4
  %296 = vperm.xlu0 %295, %v192
  %v297 = vpop.permute.xlu0 %296
  %298 = vset.pattern.permute.xlu0 4
  %299 = vperm.xlu0 %298, %v193
  %v300 = vpop.permute.xlu0 %299
  %301 = vset.pattern.permute.xlu0 4
  %302 = vperm.xlu0 %301, %v194
  %v303 = vpop.permute.xlu0 %302
  %304 = vset.pattern.permute.xlu0 4
  %305 = vperm.xlu0 %304, %v195
  %v306 = vpop.permute.xlu0 %305
  %307 = vset.pattern.permute.xlu0 4
  %308 = vperm.xlu0 %307, %v196
  %v309 = vpop.permute.xlu0 %308
  %310 = vset.pattern.permute.xlu0 4
  %311 = vperm.xlu0 %310, %v197
  %v312 = vpop.permute.xlu0 %311
  %313 = vset.pattern.permute.xlu0 4
  %314 = vperm.xlu0 %313, %v198
  %v315 = vpop.permute.xlu0 %314
  %316 = vset.pattern.permute.xlu0 4
  %317 = vperm.xlu0 %316, %v199
  %v318 = vpop.permute.xlu0 %317
  %319 = vset.pattern.permute.xlu0 4
  %320 = vperm.xlu0 %319, %v200
  %v321 = vpop.permute.xlu0 %320
  %322 = vset.pattern.permute.xlu0 4
  %323 = vperm.xlu0 %322, %v201
  %v324 = vpop.permute.xlu0 %323
  %325 = vset.pattern.permute.xlu0 4
  %326 = vperm.xlu0 %325, %v202
  %v327 = vpop.permute.xlu0 %326
  %328 = vset.pattern.permute.xlu0 4
  %329 = vperm.xlu0 %328, %v203
  %v330 = vpop.permute.xlu0 %329
  %331 = vset.pattern.permute.xlu0 4
  %332 = vperm.xlu0 %331, %v204
  %v333 = vpop.permute.xlu0 %332
  %v334 = vlaneseq
  %v335 = vand.u32 %v334, 127
  %v336 = vperm.slane %v240, %v335
  %v337 = vadd.s32 %v335, 4294967288
  %v338 = vperm.slane %v243, %v337
  %vm339 = vcmask 130112
  %v340 = vsel %vm339, %v338, %v336
  %v341 = vadd.s32 %v335, 4294967280
  %v342 = vperm.slane %v246, %v341
  %vm343 = vcmask 195712
  %v344 = vsel %vm343, %v342, %v340
  %v345 = vadd.s32 %v335, 4294967272
  %v346 = vperm.slane %v249, %v345
  %vm347 = vcmask 261312
  %v348 = vsel %vm347, %v346, %v344
  %v349 = vadd.s32 %v335, 4294967264
  %v350 = vperm.slane %v252, %v349
  %vm351 = vcmask 326912
  %v352 = vsel %vm351, %v350, %v348
  %v353 = vadd.s32 %v335, 4294967256
  %v354 = vperm.slane %v255, %v353
  %vm355 = vcmask 392512
  %v356 = vsel %vm355, %v354, %v352
  %v357 = vadd.s32 %v335, 4294967248
  %v358 = vperm.slane %v258, %v357
  %vm359 = vcmask 458112
  %v360 = vsel %vm359, %v358, %v356
  %v361 = vadd.s32 %v335, 4294967240
  %v362 = vperm.slane %v261, %v361
  %vm363 = vcmask 523712
  %v364 = vsel %vm363, %v362, %v360
  %v365 = vadd.s32 %v335, 4294967232
  %v366 = vperm.slane %v264, %v365
  %vm367 = vcmask 589312
  %v368 = vsel %vm367, %v366, %v364
  %v369 = vadd.s32 %v335, 4294967224
  %v370 = vperm.slane %v267, %v369
  %vm371 = vcmask 654912
  %v372 = vsel %vm371, %v370, %v368
  %v373 = vadd.s32 %v335, 4294967216
  %v374 = vperm.slane %v270, %v373
  %vm375 = vcmask 720512
  %v376 = vsel %vm375, %v374, %v372
  %v377 = vadd.s32 %v335, 4294967208
  %v378 = vperm.slane %v273, %v377
  %vm379 = vcmask 786112
  %v380 = vsel %vm379, %v378, %v376
  %v381 = vadd.s32 %v335, 4294967200
  %v382 = vperm.slane %v276, %v381
  %vm383 = vcmask 851712
  %v384 = vsel %vm383, %v382, %v380
  %v385 = vadd.s32 %v335, 4294967192
  %v386 = vperm.slane %v279, %v385
  %vm387 = vcmask 917312
  %v388 = vsel %vm387, %v386, %v384
  %v389 = vadd.s32 %v335, 4294967184
  %v390 = vperm.slane %v282, %v389
  %vm391 = vcmask 982912
  %v392 = vsel %vm391, %v390, %v388
  %v393 = vadd.s32 %v335, 4294967176
  %v394 = vperm.slane %v285, %v393
  %vm395 = vcmask 1048512
  %v396 = vsel %vm395, %v394, %v392
  %v397 = vperm.slane %v288, %v335
  %v398 = vperm.slane %v291, %v337
  %v399 = vsel %vm339, %v398, %v397
  %v400 = vperm.slane %v294, %v341
  %v401 = vsel %vm343, %v400, %v399
  %v402 = vperm.slane %v297, %v345
  %v403 = vsel %vm347, %v402, %v401
  %v404 = vperm.slane %v300, %v349
  %v405 = vsel %vm351, %v404, %v403
  %v406 = vperm.slane %v303, %v353
  %v407 = vsel %vm355, %v406, %v405
  %v408 = vperm.slane %v306, %v357
  %v409 = vsel %vm359, %v408, %v407
  %v410 = vperm.slane %v309, %v361
  %v411 = vsel %vm363, %v410, %v409
  %v412 = vperm.slane %v312, %v365
  %v413 = vsel %vm367, %v412, %v411
  %v414 = vperm.slane %v315, %v369
  %v415 = vsel %vm371, %v414, %v413
  %v416 = vperm.slane %v318, %v373
  %v417 = vsel %vm375, %v416, %v415
  %v418 = vperm.slane %v321, %v377
  %v419 = vsel %vm379, %v418, %v417
  %v420 = vperm.slane %v324, %v381
  %v421 = vsel %vm383, %v420, %v419
  %v422 = vperm.slane %v327, %v385
  %v423 = vsel %vm387, %v422, %v421
  %v424 = vperm.slane %v330, %v389
  %v425 = vsel %vm391, %v424, %v423
  %v426 = vperm.slane %v333, %v393
  %v427 = vsel %vm395, %v426, %v425
  %vm428 = vcmask 1041409
  %v429 = vsel %vm428, %v427, %v396
  %v431 = vmax.f32 %v205, %v429
  %432 = vst [vmem:[#allocation2] sm:$0x3] %v431
  // Predicated region
  $region10: #{tpu_custom_call.1} parent=0 // pred_check
    %p433 = pneg %p8
  $region11: #{tpu_custom_call.1} parent=0 // pred_check_branch
    %435 = sbr.rel (%p433) target = $region13
  $region12: #{tpu_custom_call.1} parent=0 // pred_region
    %v436 = vld [vmem:[#allocation2] sm:$0x3]
    %vm437 = vcmask 1041408
    %v438 = vsel %vm437, %v436, -inf
    %439 = vmax.xlane.f32.xlu0 %v438
    %v440 = vpop.xlane.xlu0 %439
    %vm441 = vcmask 1024
    %442 = vst.msk [vmem:[%s1] sm:$0x3] %vm441, %v440
  $region13: #{tpu_custom_call.1} parent=0 // pred_fallthru
    _
  // Predicated region
  $region14: #{tpu_custom_call.1} parent=0 // pred_check
    _
  $region15: #{tpu_custom_call.1} parent=0 // pred_check_branch
    %444 = sbr.rel (0) target = $region17
  $region16: #{tpu_custom_call.1} parent=0 // pred_region
    _
  $region17: #{tpu_custom_call.1} parent=0 // pred_fallthru
    _
  // Predicated region
  $region18: #{tpu_custom_call.1} parent=0 // pred_check
    _
  $region19: #{tpu_custom_call.1} parent=0 // pred_check_branch
    %446 = sbr.rel (0) target = $region21
  $region20: #{tpu_custom_call.1} parent=0 // pred_region
    _
  $region21: #{tpu_custom_call.1} parent=0 // pred_fallthru
    _

</llo_original>
